<compile_context>
chip_gen: v5e
topology: v5e:2x2
jax: 0.10.0
libtpu: 0.0.40
codegen_flags: <defaults>
</compile_context>

<pallas_src>
import functools

import jax
import jax.numpy as jnp
from jax.experimental import pallas as pl
from jax.experimental.pallas import tpu as pltpu


def _round_up(x, m):
    return (x + m - 1) // m * m


def _mlp_kernel(obs_ref, act_ref, w1o_ref, w1a_ref, w2_ref, b_ref, o_ref, *, hp):
    # fc1 split over the two input chunks (avoids any concat), f32 accumulation.
    h = (jnp.dot(obs_ref[...], w1o_ref[...], preferred_element_type=jnp.float32)
         + jnp.dot(act_ref[...], w1a_ref[...], preferred_element_type=jnp.float32)
         + b_ref[:, :hp])                                   # (TB, Hp)
    h = jnp.maximum(h, 0.0)                                 # ReLU
    out = (jnp.dot(h, w2_ref[...], preferred_element_type=jnp.float32)
           + b_ref[:, hp:])                                 # (TB, Dp), lane-dense
    o_ref[...] = out.astype(o_ref.dtype)


def prepare_params(w1, b1, w2, b2, obs_dim):
    """Pad/split raw (in,out)-layout params into kernel layout (done once)."""
    d_in, hidden = w1.shape
    act_dim = d_in - obs_dim
    d_out = w2.shape[1]
    hp = _round_up(hidden, 128)        # lane-pad hidden
    dp = _round_up(d_out, 128)         # lane-pad output

    w1p = jnp.zeros((d_in, hp), jnp.float32).at[:, :hidden].set(w1)
    w1_obs = w1p[:obs_dim]                                  # (obs_dim, Hp)
    w1_act = w1p[obs_dim:]                                  # (act_dim, Hp)
    w2p = jnp.zeros((hp, dp), jnp.float32).at[:hidden, :d_out].set(w2)
    b_packed = (jnp.zeros((1, hp + dp), jnp.float32)
                .at[0, :hidden].set(b1)
                .at[0, hp:hp + d_out].set(b2))
    return dict(w1_obs=w1_obs, w1_act=w1_act, w2=w2p, b=b_packed,
                obs_dim=obs_dim, act_dim=act_dim,
                hidden=hidden, d_out=d_out, hp=hp, dp=dp)


def simple_nn_forward_batched(obs_batch, action_batch, params):
    """Rows are independent (obs, action) samples. Returns (B, d_out)."""
    B = obs_batch.shape[0]
    obs_flat = obs_batch.reshape(B, -1).astype(jnp.float32)     # (B, obs_dim)
    act = action_batch.reshape(B, -1).astype(jnp.float32)       # (B, act_dim)

    # Pad batch to a sublane/tile multiple; single grid step for small batches,
    # 128-row tiles for large ones (weights stay VMEM-resident either way).
    if B <= 128:
        tb = _round_up(B, 8)
        bp = tb
    else:
        tb = 128
        bp = _round_up(B, tb)
    if bp != B:
        obs_flat = jnp.pad(obs_flat, ((0, bp - B), (0, 0)))
        act = jnp.pad(act, ((0, bp - B), (0, 0)))

    obs_dim, act_dim = params["obs_dim"], params["act_dim"]
    hp, dp = params["hp"], params["dp"]

    kernel = functools.partial(_mlp_kernel, hp=hp)
    out = pl.pallas_call(
        kernel,
        out_shape=jax.ShapeDtypeStruct((bp, dp), jnp.float32),
        grid_spec=pltpu.PrefetchScalarGridSpec(
            num_scalar_prefetch=0,
            grid=(bp // tb,),
            in_specs=[
                pl.BlockSpec((tb, obs_dim), lambda i: (i, 0)),      # obs tile
                pl.BlockSpec((tb, act_dim), lambda i: (i, 0)),      # action tile
                pl.BlockSpec((obs_dim, hp), lambda i: (0, 0)),      # W1[:obs]  (resident)
                pl.BlockSpec((act_dim, hp), lambda i: (0, 0)),      # W1[obs:]  (resident)
                pl.BlockSpec((hp, dp), lambda i: (0, 0)),           # W2        (resident)
                pl.BlockSpec((1, hp + dp), lambda i: (0, 0)),       # packed b1|b2
            ],
            out_specs=pl.BlockSpec((tb, dp), lambda i: (i, 0)),
        ),
        compiler_params=pltpu.CompilerParams(
            dimension_semantics=("parallel",)),                      # megacore on v7x
    )(obs_flat, act, params["w1_obs"], params["w1_act"], params["w2"], params["b"])

    return out[:B, :params["d_out"]]


def simple_nn_forward(input_obs, input_action, params):
    """Exact SimpleNN.forward semantics: flatten ALL obs dims, concat action,
    fc1 -> ReLU -> fc2. Returns a 1-D (next_obs_shape,) array."""
    obs_row = jnp.reshape(input_obs, (1, -1))        # torch.flatten -> single row
    act_row = jnp.reshape(input_action, (1, -1))
    return simple_nn_forward_batched(obs_row, act_row, params)[0]


def init_params(key, total_input_size, hidden_size, next_obs_shape):
    """Deterministic init (PyTorch-Linear-style uniform bounds), (in,out) layout."""
    k1, k2, k3, k4 = jax.random.split(key, 4)
    bound1 = 1.0 / jnp.sqrt(total_input_size)
    bound2 = 1.0 / jnp.sqrt(hidden_size)
    w1 = jax.random.uniform(k1, (total_input_size, hidden_size),
                            jnp.float32, -bound1, bound1)
    b1 = jax.random.uniform(k2, (hidden_size,), jnp.float32, -bound1, bound1)
    w2 = jax.random.uniform(k3, (hidden_size, next_obs_shape),
                            jnp.float32, -bound2, bound2)
    b2 = jax.random.uniform(k4, (next_obs_shape,), jnp.float32, -bound2, bound2)
    return w1, b1, w2, b2


if __name__ == "__main__":
    # Small shapes consistent with the module's forward.
    obs_shape = (4, 8)        # flattened -> 32
    action_shape = 8          # total_input_size = 40
    hidden_size = 32
    next_obs_shape = 16
    obs_dim = 4 * 8
    total_input_size = obs_dim + action_shape

    key = jax.random.PRNGKey(0)
    k_obs, k_act, k_params, k_bobs, k_bact = jax.random.split(key, 5)

    w1, b1, w2, b2 = init_params(k_params, total_input_size, hidden_size,
                                 next_obs_shape)
    params = prepare_params(w1, b1, w2, b2, obs_dim)

    # --- single-sample forward (matches the PyTorch module exactly) ---
    input_obs = jax.random.normal(k_obs, obs_shape, jnp.float32)
    input_action = jax.random.normal(k_act, (action_shape,), jnp.float32)
    out = simple_nn_forward(input_obs, input_action, params)
    jax.block_until_ready(out)

    x_ref = jnp.concatenate([jnp.reshape(input_obs, (-1,)), input_action], -1)
    ref = jnp.maximum(x_ref @ w1 + b1, 0.0) @ w2 + b2
    assert out.shape == (next_obs_shape,)
    assert jnp.allclose(out, ref, atol=1e-5, rtol=1e-5)

    # --- batched forward (vmap-equivalent path through the same kernel) ---
    B = 4
    obs_batch = jax.random.normal(k_bobs, (B,) + obs_shape, jnp.float32)
    act_batch = jax.random.normal(k_bact, (B, action_shape), jnp.float32)
    out_b = simple_nn_forward_batched(obs_batch, act_batch, params)
    jax.block_until_ready(out_b)

    xb = jnp.concatenate([obs_batch.reshape(B, -1), act_batch], -1)
    ref_b = jnp.maximum(xb @ w1 + b1, 0.0) @ w2 + b2
    assert out_b.shape == (B, next_obs_shape)
    assert jnp.allclose(out_b, ref_b, atol=1e-5, rtol=1e-5)

    print("KERNEL_OK")
</pallas_src>

<mosaic_0001>
module attributes {stable_mosaic.version = 11 : i64} {
  func.func @_mlp_kernel(%arg0: i32, %arg1: memref<8x32xf32, #tpu.memory_space<vmem>>, %arg2: memref<8x8xf32, #tpu.memory_space<vmem>>, %arg3: memref<32x128xf32, #tpu.memory_space<vmem>>, %arg4: memref<8x128xf32, #tpu.memory_space<vmem>>, %arg5: memref<128x128xf32, #tpu.memory_space<vmem>>, %arg6: memref<1x256xf32, #tpu.memory_space<vmem>>, %arg7: memref<8x128xf32, #tpu.memory_space<vmem>>) attributes {dimension_semantics = [#tpu.dimension_semantics<parallel>], iteration_bounds = array<i64: 1>, scalar_prefetch = 0 : i64, scratch_operands = 0 : i64, tpu.core_type = #tpu.core_type<tc>, window_params = [{transform_indices = @transform_0, window_bounds = array<i64: 8, 32>}, {transform_indices = @transform_1, window_bounds = array<i64: 8, 8>}, {pipeline_mode = #tpu.pipeline_mode<synchronous>, transform_indices = @transform_2, window_bounds = array<i64: 32, 128>}, {pipeline_mode = #tpu.pipeline_mode<synchronous>, transform_indices = @transform_3, window_bounds = array<i64: 8, 128>}, {pipeline_mode = #tpu.pipeline_mode<synchronous>, transform_indices = @transform_4, window_bounds = array<i64: 128, 128>}, {pipeline_mode = #tpu.pipeline_mode<synchronous>, transform_indices = @transform_5, window_bounds = array<i64: 1, 256>}, {transform_indices = @transform_6, window_bounds = array<i64: 8, 128>}]} {
    %c0 = arith.constant 0 : index
    %c0_0 = arith.constant 0 : index
    %0 = vector.load %arg1[%c0, %c0_0] : memref<8x32xf32, #tpu.memory_space<vmem>>, vector<8x32xf32>
    %c0_1 = arith.constant 0 : index
    %c0_2 = arith.constant 0 : index
    %1 = vector.load %arg3[%c0_1, %c0_2] : memref<32x128xf32, #tpu.memory_space<vmem>>, vector<32x128xf32>
    %cst = arith.constant dense<0.000000e+00> : vector<8x128xf32>
    %2 = tpu.matmul %0, %1, %cst {dimension_numbers = #tpu.dot_dimension_numbers<[1], [0], [0], [1], [0, 0, 1, 1], [], []>} : vector<8x32xf32>, vector<32x128xf32>, vector<8x128xf32> -> vector<8x128xf32>
    %c0_3 = arith.constant 0 : index
    %c0_4 = arith.constant 0 : index
    %3 = vector.load %arg2[%c0_3, %c0_4] : memref<8x8xf32, #tpu.memory_space<vmem>>, vector<8x8xf32>
    %c0_5 = arith.constant 0 : index
    %c0_6 = arith.constant 0 : index
    %4 = vector.load %arg4[%c0_5, %c0_6] : memref<8x128xf32, #tpu.memory_space<vmem>>, vector<8x128xf32>
    %cst_7 = arith.constant dense<0.000000e+00> : vector<8x128xf32>
    %5 = tpu.matmul %3, %4, %cst_7 {dimension_numbers = #tpu.dot_dimension_numbers<[1], [0], [0], [1], [0, 0, 1, 1], [], []>} : vector<8x8xf32>, vector<8x128xf32>, vector<8x128xf32> -> vector<8x128xf32>
    %6 = arith.addf %2, %5 : vector<8x128xf32>
    %c0_8 = arith.constant 0 : index
    %c0_9 = arith.constant 0 : index
    %7 = vector.load %arg6[%c0_8, %c0_9] : memref<1x256xf32, #tpu.memory_space<vmem>>, vector<1x128xf32>
    %8 = vector.broadcast %7 : vector<1x128xf32> to vector<8x128xf32>
    %9 = arith.addf %6, %8 : vector<8x128xf32>
    %cst_10 = arith.constant 0.000000e+00 : f32
    %10 = vector.broadcast %cst_10 : f32 to vector<8x128xf32>
    %11 = arith.maximumf %9, %10 : vector<8x128xf32>
    %c0_11 = arith.constant 0 : index
    %c0_12 = arith.constant 0 : index
    %12 = vector.load %arg5[%c0_11, %c0_12] : memref<128x128xf32, #tpu.memory_space<vmem>>, vector<128x128xf32>
    %cst_13 = arith.constant dense<0.000000e+00> : vector<8x128xf32>
    %13 = tpu.matmul %11, %12, %cst_13 {dimension_numbers = #tpu.dot_dimension_numbers<[1], [0], [0], [1], [0, 0, 1, 1], [], []>} : vector<8x128xf32>, vector<128x128xf32>, vector<8x128xf32> -> vector<8x128xf32>
    %c0_14 = arith.constant 0 : index
    %c128 = arith.constant 128 : index
    %14 = vector.load %arg6[%c0_14, %c128] : memref<1x256xf32, #tpu.memory_space<vmem>>, vector<1x128xf32>
    %15 = vector.broadcast %14 : vector<1x128xf32> to vector<8x128xf32>
    %16 = arith.addf %13, %15 : vector<8x128xf32>
    %c0_15 = arith.constant 0 : index
    %c0_16 = arith.constant 0 : index
    %17 = vector.load %arg7[%c0_15, %c0_16] : memref<8x128xf32, #tpu.memory_space<vmem>>, vector<8x128xf32>
    tpu.vector_store %arg7[%c0_15, %c0_16], %16 {strides = array<i32>} : memref<8x128xf32, #tpu.memory_space<vmem>>, vector<8x128xf32>,
    return
  }
  func.func @transform_0(%arg0: i32) -> (i32, i32) {
    %c0_i32 = arith.constant 0 : i32
    %c0_i32_0 = arith.constant 0 : i32
    return %arg0, %c0_i32 : i32, i32
  }
  func.func @transform_1(%arg0: i32) -> (i32, i32) {
    %c0_i32 = arith.constant 0 : i32
    %c0_i32_0 = arith.constant 0 : i32
    return %arg0, %c0_i32 : i32, i32
  }
  func.func @transform_2(%arg0: i32) -> (i32, i32) {
    %c0_i32 = arith.constant 0 : i32
    %c0_i32_0 = arith.constant 0 : i32
    %c0_i32_1 = arith.constant 0 : i32
    return %c0_i32, %c0_i32_0 : i32, i32
  }
  func.func @transform_3(%arg0: i32) -> (i32, i32) {
    %c0_i32 = arith.constant 0 : i32
    %c0_i32_0 = arith.constant 0 : i32
    %c0_i32_1 = arith.constant 0 : i32
    return %c0_i32, %c0_i32_0 : i32, i32
  }
  func.func @transform_4(%arg0: i32) -> (i32, i32) {
    %c0_i32 = arith.constant 0 : i32
    %c0_i32_0 = arith.constant 0 : i32
    %c0_i32_1 = arith.constant 0 : i32
    return %c0_i32, %c0_i32_0 : i32, i32
  }
  func.func @transform_5(%arg0: i32) -> (i32, i32) {
    %c0_i32 = arith.constant 0 : i32
    %c0_i32_0 = arith.constant 0 : i32
    %c0_i32_1 = arith.constant 0 : i32
    return %c0_i32, %c0_i32_0 : i32, i32
  }
  func.func @transform_6(%arg0: i32) -> (i32, i32) {
    %c0_i32 = arith.constant 0 : i32
    %c0_i32_0 = arith.constant 0 : i32
    return %arg0, %c0_i32 : i32, i32
  }
}

</mosaic_0001>

<llo_original>
// kernel: tpu_custom_call.1
$region0: #{tpu_custom_call.1}
  #allocation0 [shape = 'u32[]', space=smem, size = 0x4, offset = 0x4, fixed_abs, tag = 'smem constant byte address 0x4 - core index']
  #allocation1 [shape = 'u32[72,128]{1,0:T(1,128)}', space=vmem, size = 0x9000, scoped, tag = 'internal scratch']
  %s0 = inlined_call_operand.hbm [shape: f32[8,32], index: 0, kind: input, shape index: {}]
  %s1 = inlined_call_operand.hbm [shape: f32[8,8], index: 1, kind: input, shape index: {}]
  %s2 = inlined_call_operand.hbm [shape: f32[32,128], index: 2, kind: input, shape index: {}]
  %s3 = inlined_call_operand.hbm [shape: f32[8,128], index: 3, kind: input, shape index: {}]
  %s4 = inlined_call_operand.hbm [shape: f32[128,128], index: 4, kind: input, shape index: {}]
  %s5 = inlined_call_operand.vmem [shape: f32[1,256], index: 5, kind: input, shape index: {}]
  %s6 = inlined_call_operand.hbm [shape: f32[8,128], index: 6, kind: output, shape index: {}]
  %s7 = sld [smem:[#allocation0]]
  $region54: #{tpu_custom_call.1} parent=0
    _
  %s9 = ssub.s32 1, %s7
  %s10 = scalar_select 0, %s9, %s7
  $region1: #{tpu_custom_call.1} parent=0
    #allocation2 [shape = 'u8[4096]{0}', space=vmem, size = 0x1000, scoped, tag = 'input window, operand 0, single buffered']
    #allocation3 [shape = 's32[1]{0}', space=sflag, size = 0x4, scoped, tag = 'scoped memory for tpu_custom_call.1']
    #allocation4 [shape = 's32[1]{0}', space=sflag, size = 0x4, scoped, tag = 'scoped memory for tpu_custom_call.1']
    #allocation5 [shape = 'u8[4096]{0}', space=vmem, size = 0x1000, scoped, tag = 'input window, operand 1, single buffered']
    #allocation6 [shape = 's32[1]{0}', space=sflag, size = 0x4, scoped, tag = 'scoped memory for tpu_custom_call.1']
    #allocation7 [shape = 'u8[16384]{0}', space=vmem, size = 0x4000, scoped, tag = 'input window, operand 2, single buffered']
    #allocation8 [shape = 'u8[4096]{0}', space=vmem, size = 0x1000, scoped, tag = 'input window, operand 3, single buffered']
    #allocation9 [shape = 's32[1]{0}', space=sflag, size = 0x4, scoped, tag = 'scoped memory for tpu_custom_call.1']
    #allocation10 [shape = 'u8[65536]{0}', space=vmem, size = 0x10000, scoped, tag = 'input window, operand 4, single buffered']
    #allocation11 [shape = 'u8[4096]{0}', space=vmem, size = 0x1000, scoped, tag = 'output window, operand 0, single buffered']
    %11 = vsyncpa [#allocation3], 0
    %12 = vsyncpa [#allocation6], 0
    %13 = vsyncpa [#allocation9], 0
    %14 = vsyncpa [#allocation4], 0
    // Predicated region
    $region2: #{tpu_custom_call.1} parent=1 // pred_check
      _
    $region3: #{tpu_custom_call.1} parent=1 // pred_check_branch
      %16 = sbr.rel (0) target = $region5
    $region4: #{tpu_custom_call.1} parent=1 // pred_region
      %18 = vsyncadd [#allocation3], 0
      %s20 = sshll.u32 %s0, 4
      %s21 = int_to_ptr.hbm [resolvable:$true] %s20
      %s22 = sshll.u32 [#allocation2], 4
      %s23 = int_to_ptr.vmem [resolvable:$true] %s22
      %25 = dma.hbm_to_vmem [thread:$0]  %s21, 128, %s23, [#allocation3]
    $region5: #{tpu_custom_call.1} parent=1 // pred_fallthru
      _
    // Predicated region
    $region6: #{tpu_custom_call.1} parent=1 // pred_check
      _
    $region7: #{tpu_custom_call.1} parent=1 // pred_check_branch
      %27 = sbr.rel (0) target = $region9
    $region8: #{tpu_custom_call.1} parent=1 // pred_region
      %29 = vsyncadd [#allocation6], 0
      %s31 = sshll.u32 %s1, 4
      %s32 = int_to_ptr.hbm [resolvable:$true] %s31
      %s33 = sshll.u32 [#allocation5], 4
      %s34 = int_to_ptr.vmem [resolvable:$true] %s33
      %36 = dma.hbm_to_vmem [thread:$0]  %s32, 128, %s34, [#allocation6]
    $region9: #{tpu_custom_call.1} parent=1 // pred_fallthru
      _
    // Predicated region
    $region10: #{tpu_custom_call.1} parent=1 // pred_check
      _
    $region11: #{tpu_custom_call.1} parent=1 // pred_check_branch
      %38 = sbr.rel (0) target = $region13
    $region12: #{tpu_custom_call.1} parent=1 // pred_region
      %40 = vsyncadd [#allocation6], 0
      %s41 = sshll.u32 %s2, 4
      %s42 = int_to_ptr.hbm [resolvable:$true] %s41
      %s43 = sshll.u32 [#allocation7], 4
      %s44 = int_to_ptr.vmem [resolvable:$true] %s43
      %49 = dma.hbm_to_vmem [thread:$0]  %s42, 512, %s44, [#allocation6], 128, 128, 8
    $region13: #{tpu_custom_call.1} parent=1 // pred_fallthru
      _
    // Predicated region
    $region14: #{tpu_custom_call.1} parent=1 // pred_check
      _
    $region15: #{tpu_custom_call.1} parent=1 // pred_check_branch
      %51 = sbr.rel (0) target = $region17
    $region16: #{tpu_custom_call.1} parent=1 // pred_region
      %53 = vsyncadd [#allocation9], 0
      %s55 = sshll.u32 %s3, 4
      %s56 = int_to_ptr.hbm [resolvable:$true] %s55
      %s57 = sshll.u32 [#allocation8], 4
      %s58 = int_to_ptr.vmem [resolvable:$true] %s57
      %60 = dma.hbm_to_vmem [thread:$0]  %s56, 128, %s58, [#allocation9]
    $region17: #{tpu_custom_call.1} parent=1 // pred_fallthru
      _
    // Predicated region
    $region18: #{tpu_custom_call.1} parent=1 // pred_check
      _
    $region19: #{tpu_custom_call.1} parent=1 // pred_check_branch
      %62 = sbr.rel (0) target = $region21
    $region20: #{tpu_custom_call.1} parent=1 // pred_region
      %64 = vsyncadd [#allocation9], 0
      %s65 = sshll.u32 %s4, 4
      %s66 = int_to_ptr.hbm [resolvable:$true] %s65
      %s67 = sshll.u32 [#allocation10], 4
      %s68 = int_to_ptr.vmem [resolvable:$true] %s67
      %73 = dma.hbm_to_vmem [thread:$0]  %s66, 2048, %s68, [#allocation9], 128, 128, 8
    $region21: #{tpu_custom_call.1} parent=1 // pred_fallthru
      _
    // Predicated region
    $region22: #{tpu_custom_call.1} parent=1 // pred_check
      _
    $region23: #{tpu_custom_call.1} parent=1 // pred_check_branch
      %75 = sbr.rel (0) target = $region25
    $region24: #{tpu_custom_call.1} parent=1 // pred_region
      _
    $region25: #{tpu_custom_call.1} parent=1 // pred_fallthru
      _
    // Predicated region
    $region26: #{tpu_custom_call.1} parent=1 // pred_check
      _
    $region27: #{tpu_custom_call.1} parent=1 // pred_check_branch
      %77 = sbr.rel (0) target = $region29
    $region28: #{tpu_custom_call.1} parent=1 // pred_region
      %79 = dma.done [#allocation3], 128
    $region29: #{tpu_custom_call.1} parent=1 // pred_fallthru
      _
    // Predicated region
    $region30: #{tpu_custom_call.1} parent=1 // pred_check
      _
    $region31: #{tpu_custom_call.1} parent=1 // pred_check_branch
      %81 = sbr.rel (0) target = $region33
    $region32: #{tpu_custom_call.1} parent=1 // pred_region
      %83 = dma.done [#allocation6], 128
    $region33: #{tpu_custom_call.1} parent=1 // pred_fallthru
      _
    // Predicated region
    $region34: #{tpu_custom_call.1} parent=1 // pred_check
      _
    $region35: #{tpu_custom_call.1} parent=1 // pred_check_branch
      %85 = sbr.rel (0) target = $region37
    $region36: #{tpu_custom_call.1} parent=1 // pred_region
      %87 = dma.done [#allocation6], 512
    $region37: #{tpu_custom_call.1} parent=1 // pred_fallthru
      _
    // Predicated region
    $region38: #{tpu_custom_call.1} parent=1 // pred_check
      _
    $region39: #{tpu_custom_call.1} parent=1 // pred_check_branch
      %89 = sbr.rel (0) target = $region41
    $region40: #{tpu_custom_call.1} parent=1 // pred_region
      %91 = dma.done [#allocation9], 128
    $region41: #{tpu_custom_call.1} parent=1 // pred_fallthru
      _
    // Predicated region
    $region42: #{tpu_custom_call.1} parent=1 // pred_check
      _
    $region43: #{tpu_custom_call.1} parent=1 // pred_check_branch
      %93 = sbr.rel (0) target = $region45
    $region44: #{tpu_custom_call.1} parent=1 // pred_region
      %95 = dma.done [#allocation9], 2048
    $region45: #{tpu_custom_call.1} parent=1 // pred_fallthru
      _
    %v96 = vld [vmem:[#allocation2] sm:$0xff]
    %v97 = vld [vmem:[#allocation7] sm:$0xff]
    %v98 = vld [vmem:[#allocation7 + $0x8] sm:$0xff]
    %v99 = vld [vmem:[#allocation7 + $0x10] sm:$0xff]
    %v100 = vld [vmem:[#allocation7 + $0x18] sm:$0xff]
    %v101 = vld [vmem:[#allocation5] sm:$0xff]
    %v102 = vld [vmem:[#allocation8] sm:$0xff]
    %vm103 = vcmask 64512
    %v105 = vsel %vm103, %v101, 0
    %107 = vmatpush.msra.mxu0 0.0
    %108 = vmatpush.msra.mxu0 0.0
    %109 = vmatpush.msra.mxu0 0.0
    %110 = vmatpush.msra.mxu0 0.0
    %111 = vmatpush.msra.mxu0 0.0
    %112 = vmatpush.msra.mxu0 0.0
    %113 = vmatpush.msra.mxu0 0.0
    %114 = vmatpush.msra.mxu0 0.0
    %115 = vmatpush.msra.mxu0 0.0
    %116 = vmatpush.msra.mxu0 0.0
    %117 = vmatpush.msra.mxu0 0.0
    %118 = vmatpush.msra.mxu0 0.0
    %119 = vmatpush.msra.mxu0 0.0
    %120 = vmatpush.msra.mxu0 0.0
    %121 = vmatpush.msra.mxu0 0.0
    %122 = vmatpush.msra.mxu0 %v102
    %123 = vmatmul.f32.gmra.mxu0 %v105
    %v124 = vpop.f32.mrf.mxu0
    %v125 = vadd.f32 0.0, %v124
    %126 = vdwg.mxu0
    %vm127 = vcmask 261120
    %v129 = vsel %vm127, %v96, 0
    %131 = vmatpush.msra.mxu0 0.0
    %132 = vmatpush.msra.mxu0 0.0
    %133 = vmatpush.msra.mxu0 0.0
    %134 = vmatpush.msra.mxu0 0.0
    %135 = vmatpush.msra.mxu0 0.0
    %136 = vmatpush.msra.mxu0 0.0
    %137 = vmatpush.msra.mxu0 0.0
    %138 = vmatpush.msra.mxu0 0.0
    %139 = vmatpush.msra.mxu0 0.0
    %140 = vmatpush.msra.mxu0 0.0
    %141 = vmatpush.msra.mxu0 0.0
    %142 = vmatpush.msra.mxu0 0.0
    %143 = vmatpush.msra.mxu0 %v100
    %144 = vmatpush.msra.mxu0 %v99
    %145 = vmatpush.msra.mxu0 %v98
    %146 = vmatpush.msra.mxu0 %v97
    %147 = vmatmul.f32.gmra.mxu0 %v129
    %v148 = vpop.f32.mrf.mxu0
    %v149 = vadd.f32 %v125, %v148
    %150 = vdwg.mxu0
    %v151 = vld [vmem:[%s5] sm:$0x1]
    %v153 = vperm.slane %v151, 0
    %v155 = vadd.f32 %v149, %v153
    %v156 = vmax.f32 %v155, 0.0
    %v157 = vld [vmem:[#allocation10] sm:$0xff]
    %v158 = vld [vmem:[#allocation10 + $0x8] sm:$0xff]
    %v159 = vld [vmem:[#allocation10 + $0x10] sm:$0xff]
    %v160 = vld [vmem:[#allocation10 + $0x18] sm:$0xff]
    %v161 = vld [vmem:[#allocation10 + $0x20] sm:$0xff]
    %v162 = vld [vmem:[#allocation10 + $0x28] sm:$0xff]
    %v163 = vld [vmem:[#allocation10 + $0x30] sm:$0xff]
    %v164 = vld [vmem:[#allocation10 + $0x38] sm:$0xff]
    %v165 = vld [vmem:[#allocation10 + $0x40] sm:$0xff]
    %v166 = vld [vmem:[#allocation10 + $0x48] sm:$0xff]
    %v167 = vld [vmem:[#allocation10 + $0x50] sm:$0xff]
    %v168 = vld [vmem:[#allocation10 + $0x58] sm:$0xff]
    %v169 = vld [vmem:[#allocation10 + $0x60] sm:$0xff]
    %v170 = vld [vmem:[#allocation10 + $0x68] sm:$0xff]
    %v171 = vld [vmem:[#allocation10 + $0x70] sm:$0xff]
    %v172 = vld [vmem:[#allocation10 + $0x78] sm:$0xff]
    %v173 = vld [vmem:[%s5 + $0x1] sm:$0x1]
    %v175 = vperm.slane %v173, 0
    %177 = vmatpush.msra.mxu0 %v172
    %178 = vmatpush.msra.mxu0 %v171
    %179 = vmatpush.msra.mxu0 %v170
    %180 = vmatpush.msra.mxu0 %v169
    %181 = vmatpush.msra.mxu0 %v168
    %182 = vmatpush.msra.mxu0 %v167
    %183 = vmatpush.msra.mxu0 %v166
    %184 = vmatpush.msra.mxu0 %v165
    %185 = vmatpush.msra.mxu0 %v164
    %186 = vmatpush.msra.mxu0 %v163
    %187 = vmatpush.msra.mxu0 %v162
    %188 = vmatpush.msra.mxu0 %v161
    %189 = vmatpush.msra.mxu0 %v160
    %190 = vmatpush.msra.mxu0 %v159
    %191 = vmatpush.msra.mxu0 %v158
    %192 = vmatpush.msra.mxu0 %v157
    %193 = vmatmul.f32.gmra.mxu0 %v156
    %v194 = vpop.f32.mrf.mxu0
    %v195 = vadd.f32 %v175, %v194
    %196 = vdwg.mxu0
    %197 = vst [vmem:[#allocation11] sm:$0xff] %v195
    // Predicated region
    $region46: #{tpu_custom_call.1} parent=1 // pred_check
      _
    $region47: #{tpu_custom_call.1} parent=1 // pred_check_branch
      %199 = sbr.rel (0) target = $region49
    $region48: #{tpu_custom_call.1} parent=1 // pred_region
      %201 = vsyncadd [#allocation4], 0
      %s203 = sshll.u32 [#allocation11], 4
      %s204 = int_to_ptr.vmem [resolvable:$true] %s203
      %s205 = sshll.u32 %s6, 4
      %s206 = int_to_ptr.hbm [resolvable:$true] %s205
      %208 = dma.vmem_to_hbm [thread:$0]  %s204, 128, %s206, [#allocation4]
    $region49: #{tpu_custom_call.1} parent=1 // pred_fallthru
      _
    // Predicated region
    $region50: #{tpu_custom_call.1} parent=1 // pred_check
      _
    $region51: #{tpu_custom_call.1} parent=1 // pred_check_branch
      %210 = sbr.rel (0) target = $region53
    $region52: #{tpu_custom_call.1} parent=1 // pred_region
      %212 = dma.done [#allocation4], 128
    $region53: #{tpu_custom_call.1} parent=1 // pred_fallthru
      _
    %213 = vsyncpa [#allocation3], 1
    %214 = vsyncpa [#allocation6], 1
    %215 = vsyncpa [#allocation9], 1
    %216 = vsyncpa [#allocation4], 1

</llo_original>
